<compile_context>
chip_gen: v7x
topology: tpu7x:2x2x1
jax: 0.10.0
libtpu: 0.0.40
codegen_flags: <defaults>
</compile_context>

<pallas_src>
import functools

import jax
import jax.numpy as jnp
from jax.experimental import pallas as pl
from jax.experimental.pallas import tpu as pltpu


# ---------------------------------------------------------------------------
# TPU-generation-aware tuning knobs (decided at trace time, Python level)
# ---------------------------------------------------------------------------
def _tpu_generation():
    try:
        kind = jax.devices()[0].device_kind.lower()
    except Exception:
        return "unknown"
    if "v7" in kind or "tpu7" in kind or "7x" in kind:
        return "v7"
    if "v6" in kind:
        return "v6"
    if "v5" in kind:
        return "v5"
    return "unknown"


_GEN = _tpu_generation()
# bf16 EUP/VPU exists on v6e/v7x; v5e (and unknown chips) keep f32 transcendentals.
_USE_BF16_EUP = _GEN in ("v6", "v7")
_EUP_DTYPE = jnp.bfloat16 if _USE_BF16_EUP else jnp.float32
# Batch-tile cap, per-step VMEM working budget, and explicit scoped-VMEM limit.
_TILE_CAP = {"v5": 1024, "v6": 2048, "v7": 1024}.get(_GEN, 1024)
_VMEM_BUDGET = {"v5": 12 << 20, "v6": 24 << 20, "v7": 24 << 20}.get(_GEN, 12 << 20)
_VMEM_LIMIT = {"v5": 64 << 20, "v6": 96 << 20, "v7": 48 << 20}.get(_GEN, 64 << 20)


def _round_up(a, m):
    return (a + m - 1) // m * m


# ---------------------------------------------------------------------------
# In-kernel math
# ---------------------------------------------------------------------------
def _mish(x, eup_dtype):
    """mish(x) = x * tanh(softplus(x)).

    With u = exp(x):  tanh(softplus(x)) = n/(n+2) = 1 - 2/(n+2),  n = u*(u+2).
    -> one exp (EUP; bf16 on v6e/v7x) + one approx reciprocal (EUP; f32, since
    pl.reciprocal lowering is f32-only), no divide and no select.  The single
    min keeps exp finite so the reciprocal never sees inf; for x >= 20 the tail
    rounds to exactly 1.0, so multiplying the unclamped x is exact.
    """
    u = jnp.exp(jnp.minimum(x, 20.0).astype(eup_dtype)).astype(jnp.float32)
    n = u * (u + 2.0)
    t = 1.0 - 2.0 * pl.reciprocal(n + 2.0, approx=True)
    return x * t


def _double_critic_kernel(
    obs_ref, act_ref,                       # (TILE_B, S) / (TILE_B, A)   f32
    w1o_ref, w1a_ref, b1_ref,               # fused layer 1: [S,2Hp] [A,2Hp] bf16, [1,2Hp] f32
    w2a_ref, b2a_ref,                       # critic-1 layer 2: [Hp,Hp] bf16, [1,Hp] f32
    w2b_ref, b2b_ref,                       # critic-2 layer 2: [Hp,Hp] bf16, [1,Hp] f32
    w3a_ref, w3b_ref, b3_ref,               # fused heads: [Hp,2] bf16 (zero-padded cols), [1,2] f32
    q_ref,                                  # (TILE_B, 2)  col 0 = q1, col 1 = q2
    *, eup_dtype, hidden_pad,
):
    cdt = w1o_ref.dtype                     # bf16 compute dtype for MXU inputs
    hp = hidden_pad

    obs = obs_ref[...].astype(cdt)
    act = act_ref[...].astype(cdt)

    # ----- layer 1 (both critics fused along the output/lane axis) -----
    h1 = jnp.dot(obs, w1o_ref[...], preferred_element_type=jnp.float32)
    h1 = h1 + jnp.dot(act, w1a_ref[...], preferred_element_type=jnp.float32)
    h1 = _mish(h1 + b1_ref[...], eup_dtype)

    # hp is a multiple of 128 -> these lane slices are tile-aligned (no relayout)
    h1a = h1[:, :hp].astype(cdt)
    h1b = h1[:, hp:].astype(cdt)

    # ----- layer 2 (per critic) -----
    h2a = _mish(jnp.dot(h1a, w2a_ref[...],
                        preferred_element_type=jnp.float32) + b2a_ref[...], eup_dtype)
    h2b = _mish(jnp.dot(h1b, w2b_ref[...],
                        preferred_element_type=jnp.float32) + b2b_ref[...], eup_dtype)

    # ----- layer 3 (both heads fused into one [TILE_B, 2] store) -----
    q = jnp.dot(h2a.astype(cdt), w3a_ref[...], preferred_element_type=jnp.float32)
    q = q + jnp.dot(h2b.astype(cdt), w3b_ref[...], preferred_element_type=jnp.float32)
    q_ref[...] = (q + b3_ref[...]).astype(q_ref.dtype)


# ---------------------------------------------------------------------------
# Parameters
# ---------------------------------------------------------------------------
def init_params(key, state_dim, action_dim, hidden_dim=256, dtype=jnp.float32):
    """Raw params mirroring the PyTorch module (weights [in,out], biases [1,out]).
    Order: (w1,b1,w2,b2,w3,b3) for q1 then q2."""
    in_dim = state_dim + action_dim
    dims = [(in_dim, hidden_dim), (hidden_dim, hidden_dim), (hidden_dim, 1)]
    params = []
    for _net in range(2):
        for din, dout in dims:
            key, kw, kb = jax.random.split(key, 3)
            bound = 1.0 / jnp.sqrt(din)
            w = jax.random.uniform(kw, (din, dout), dtype, -bound, bound)
            b = jax.random.uniform(kb, (1, dout), dtype, -bound, bound)
            params += [w, b]
    return tuple(params)


def fuse_params(params, state_dim, compute_dtype=jnp.bfloat16):
    """One-time prep: fuse the twin critics' layer-1 (out axis) and heads
    (zero-padded [Hp,2]), split layer-1 rows between obs/act, zero-pad the
    hidden dim up to a multiple of 128 (lane-aligned h1 split), cast weights
    to the MXU compute dtype."""
    (w1_1, b1_1, w2_1, b2_1, w3_1, b3_1,
     w1_2, b1_2, w2_2, b2_2, w3_2, b3_2) = params
    cdt = compute_dtype
    H = w2_1.shape[0]
    Hp = _round_up(H, 128)
    ph = Hp - H

    pad_cols = lambda w: jnp.pad(w, ((0, 0), (0, ph)))   # [*, H] -> [*, Hp]
    pad_rows = lambda w: jnp.pad(w, ((0, ph), (0, 0)))   # [H, *] -> [Hp, *]
    pad_both = lambda w: jnp.pad(w, ((0, ph), (0, ph)))  # [H, H] -> [Hp, Hp]

    w1 = jnp.concatenate([pad_cols(w1_1), pad_cols(w1_2)], axis=1)    # [S+A, 2Hp]
    w1_obs = w1[:state_dim].astype(cdt)                               # [S, 2Hp]
    w1_act = w1[state_dim:].astype(cdt)                               # [A, 2Hp]
    b1 = jnp.concatenate([pad_cols(b1_1), pad_cols(b1_2)], axis=1).astype(jnp.float32)

    w2a = pad_both(w2_1).astype(cdt)
    b2a = pad_cols(b2_1).astype(jnp.float32)
    w2b = pad_both(w2_2).astype(cdt)
    b2b = pad_cols(b2_2).astype(jnp.float32)

    z = jnp.zeros((Hp, 1), w3_1.dtype)
    w3a = jnp.concatenate([pad_rows(w3_1), z], axis=1).astype(cdt)    # [Hp, 2] -> col 0
    w3b = jnp.concatenate([z, pad_rows(w3_2)], axis=1).astype(cdt)    # [Hp, 2] -> col 1
    b3 = jnp.concatenate([b3_1, b3_2], axis=1).astype(jnp.float32)    # [1, 2]

    return (w1_obs, w1_act, b1, w2a, b2a, w2b, b2b, w3a, w3b, b3)


# ---------------------------------------------------------------------------
# Tile selection (generation-aware, derived from the problem dims)
# ---------------------------------------------------------------------------
def _select_tile_b(batch_padded, s_dim, a_dim, hp):
    # Approximate per-row VMEM use: double-buffered streamed tiles + intermediates.
    per_row = (2 * 4 * (s_dim + a_dim + 2)    # f32 obs/act/out tiles, x2 buffers
               + 2 * (s_dim + a_dim)          # bf16 copies of obs/act
               + (4 + 2) * 2 * hp             # f32 h1 + bf16 halves
               + (4 + 2) * 2 * hp             # f32 h2a/h2b + bf16 copies
               + 8)
    weights = (2 * (s_dim + a_dim) * 2 * hp + 4 * 2 * hp   # w1 + b1
               + 2 * 2 * hp * hp + 2 * 4 * hp              # w2a/w2b + b2a/b2b
               + 2 * 2 * hp * 2 + 8)                       # w3a/w3b + b3
    avail = max(_VMEM_BUDGET - weights, 1 << 20)
    tile = min(_TILE_CAP, max(int(avail) // per_row, 8))
    if _GEN == "v7":
        # Keep >= 2 grid steps so "parallel" shards across both TensorCores.
        half = -(-batch_padded // 2)
        tile = min(tile, _round_up(half, 8))
    tile = min(tile, batch_padded)
    tile = max((tile // 8) * 8, 8)
    return tile


def _resident_spec(arr):
    """Full-extent, VMEM-resident block. Its index never changes, so single-buffer
    it (default double buffer is wasted VMEM)."""
    try:
        return pl.BlockSpec(arr.shape, lambda i: (0, 0), pipeline_mode=pl.Buffered(1))
    except Exception:  # older pallas without pipeline_mode: fall back gracefully
        return pl.BlockSpec(arr.shape, lambda i: (0, 0))


# ---------------------------------------------------------------------------
# Forward wrapper
# ---------------------------------------------------------------------------
@jax.jit
def double_critic_forward(obs, act, fused_params):
    (w1_obs, w1_act, b1, w2a, b2a, w2b, b2b, w3a, w3b, b3) = fused_params
    B = obs.shape[0]
    obs2 = obs.reshape(B, -1).astype(jnp.float32)
    act2 = act.reshape(B, -1).astype(jnp.float32)
    S, A = obs2.shape[1], act2.shape[1]
    Hp = w2a.shape[0]

    B8 = _round_up(max(B, 1), 8)
    tile_b = _select_tile_b(B8, S, A, Hp)
    Bp = _round_up(B8, tile_b)
    if Bp != B:
        obs2 = jnp.pad(obs2, ((0, Bp - B), (0, 0)))
        act2 = jnp.pad(act2, ((0, Bp - B), (0, 0)))

    def stream_spec(d):
        return pl.BlockSpec((tile_b, d), lambda i: (i, 0))

    kernel = functools.partial(_double_critic_kernel,
                               eup_dtype=_EUP_DTYPE, hidden_pad=Hp)

    q12 = pl.pallas_call(
        kernel,
        out_shape=jax.ShapeDtypeStruct((Bp, 2), jnp.float32),
        grid=(Bp // tile_b,),
        in_specs=[
            stream_spec(S), stream_spec(A),
            _resident_spec(w1_obs), _resident_spec(w1_act), _resident_spec(b1),
            _resident_spec(w2a), _resident_spec(b2a),
            _resident_spec(w2b), _resident_spec(b2b),
            _resident_spec(w3a), _resident_spec(w3b), _resident_spec(b3),
        ],
        out_specs=stream_spec(2),
        compiler_params=pltpu.CompilerParams(
            dimension_semantics=("parallel",),
            vmem_limit_bytes=_VMEM_LIMIT,
        ),
    )(obs2, act2, w1_obs, w1_act, b1, w2a, b2a, w2b, b2b, w3a, w3b, b3)

    q12 = q12[:B]
    return q12[:, 0:1], q12[:, 1:2]


def q_min(obs, act, fused_params):
    q1, q2 = double_critic_forward(obs, act, fused_params)
    return jnp.minimum(q1, q2)


# ---------------------------------------------------------------------------
# Pure-JAX references
# ---------------------------------------------------------------------------
def _reference_forward(obs, act, params, *, matmul_dtype=jnp.float32,
                       eup_dtype=jnp.float32):
    """matmul_dtype/eup_dtype let the reference emulate the kernel's dtype policy."""
    B = obs.shape[0]
    x = jnp.concatenate([obs.reshape(B, -1), act.reshape(B, -1)], axis=1)

    def mish(v):
        if eup_dtype == jnp.float32:
            return v * jnp.tanh(jax.nn.softplus(v))
        u = jnp.exp(jnp.minimum(v, 20.0).astype(eup_dtype)).astype(jnp.float32)
        n = u * (u + 2.0)
        return v * (1.0 - 2.0 / (n + 2.0))

    def dot(a, w):
        return jnp.dot(a.astype(matmul_dtype), w.astype(matmul_dtype),
                       preferred_element_type=jnp.float32)

    def mlp(p):
        w1, b1, w2, b2, w3, b3 = p
        h = mish(dot(x, w1) + b1)
        h = mish(dot(h, w2) + b2)
        return dot(h, w3) + b3

    return mlp(params[0:6]), mlp(params[6:12])


# ---------------------------------------------------------------------------
# Self-test
# ---------------------------------------------------------------------------
if __name__ == "__main__":
    key = jax.random.PRNGKey(0)
    state_dim, action_dim, hidden_dim = 16, 8, 32

    kp = jax.random.fold_in(key, 1)
    raw_params = init_params(kp, state_dim, action_dim, hidden_dim)
    fused = fuse_params(raw_params, state_dim)

    for batch in (8, 5):  # second case exercises the batch-padding path
        kb = jax.random.fold_in(key, batch)
        ko, ka = jax.random.split(kb)
        obs = jax.random.normal(ko, (batch, 4, 4), jnp.float32)   # reshaped in-wrapper
        act = jax.random.normal(ka, (batch, action_dim), jnp.float32)

        q1, q2 = double_critic_forward(obs, act, fused)
        jax.block_until_ready((q1, q2))
        assert q1.shape == (batch, 1) and q2.shape == (batch, 1)

        # Check vs a reference that emulates the kernel's dtype policy
        # (bf16 matmuls; bf16 exp in Mish on v6e/v7x).
        r1m, r2m = _reference_forward(obs, act, raw_params,
                                      matmul_dtype=jnp.bfloat16,
                                      eup_dtype=_EUP_DTYPE)
        assert jnp.allclose(q1, r1m, atol=2e-2, rtol=2e-2)
        assert jnp.allclose(q2, r2m, atol=2e-2, rtol=2e-2)

        # Looser check vs the exact f32 reference.
        r1f, r2f = _reference_forward(obs, act, raw_params)
        assert jnp.allclose(q1, r1f, atol=6e-2, rtol=6e-2)
        assert jnp.allclose(q2, r2f, atol=6e-2, rtol=6e-2)

        qmin = q_min(obs, act, fused)
        jax.block_until_ready(qmin)
        assert jnp.allclose(qmin, jnp.minimum(q1, q2))

    # Saturation test: huge pre-activations must not leak NaN/Inf through the
    # reciprocal-based Mish (review correctness concern).
    kb = jax.random.fold_in(key, 999)
    ko, ka = jax.random.split(kb)
    obs_big = jax.random.normal(ko, (8, 4, 4), jnp.float32) * 1e3
    act_big = jax.random.normal(ka, (8, action_dim), jnp.float32) * 1e3
    q1b, q2b = double_critic_forward(obs_big, act_big, fused)
    jax.block_until_ready((q1b, q2b))
    assert bool(jnp.isfinite(q1b).all()) and bool(jnp.isfinite(q2b).all())

    print("KERNEL_OK")
</pallas_src>

<mosaic_0001>
module attributes {stable_mosaic.version = 11 : i64} {
  func.func @_double_critic_kernel(%arg0: i32, %arg1: memref<8x16xf32, #tpu.memory_space<vmem>>, %arg2: memref<8x8xf32, #tpu.memory_space<vmem>>, %arg3: memref<16x256xbf16, #tpu.memory_space<vmem>>, %arg4: memref<8x256xbf16, #tpu.memory_space<vmem>>, %arg5: memref<1x256xf32, #tpu.memory_space<vmem>>, %arg6: memref<128x128xbf16, #tpu.memory_space<vmem>>, %arg7: memref<1x128xf32, #tpu.memory_space<vmem>>, %arg8: memref<128x128xbf16, #tpu.memory_space<vmem>>, %arg9: memref<1x128xf32, #tpu.memory_space<vmem>>, %arg10: memref<128x2xbf16, #tpu.memory_space<vmem>>, %arg11: memref<128x2xbf16, #tpu.memory_space<vmem>>, %arg12: memref<1x2xf32, #tpu.memory_space<vmem>>, %arg13: memref<8x2xf32, #tpu.memory_space<vmem>>) attributes {dimension_semantics = [#tpu.dimension_semantics<parallel>], iteration_bounds = array<i64: 1>, scalar_prefetch = 0 : i64, scratch_operands = 0 : i64, tpu.core_type = #tpu.core_type<tc>, window_params = [{transform_indices = @transform_0, window_bounds = array<i64: 8, 16>}, {transform_indices = @transform_1, window_bounds = array<i64: 8, 8>}, {pipeline_mode = #tpu.pipeline_mode<synchronous>, transform_indices = @transform_2, window_bounds = array<i64: 16, 256>}, {pipeline_mode = #tpu.pipeline_mode<synchronous>, transform_indices = @transform_3, window_bounds = array<i64: 8, 256>}, {pipeline_mode = #tpu.pipeline_mode<synchronous>, transform_indices = @transform_4, window_bounds = array<i64: 1, 256>}, {pipeline_mode = #tpu.pipeline_mode<synchronous>, transform_indices = @transform_5, window_bounds = array<i64: 128, 128>}, {pipeline_mode = #tpu.pipeline_mode<synchronous>, transform_indices = @transform_6, window_bounds = array<i64: 1, 128>}, {pipeline_mode = #tpu.pipeline_mode<synchronous>, transform_indices = @transform_7, window_bounds = array<i64: 128, 128>}, {pipeline_mode = #tpu.pipeline_mode<synchronous>, transform_indices = @transform_8, window_bounds = array<i64: 1, 128>}, {pipeline_mode = #tpu.pipeline_mode<synchronous>, transform_indices = @transform_9, window_bounds = array<i64: 128, 2>}, {pipeline_mode = #tpu.pipeline_mode<synchronous>, transform_indices = @transform_10, window_bounds = array<i64: 128, 2>}, {pipeline_mode = #tpu.pipeline_mode<synchronous>, transform_indices = @transform_11, window_bounds = array<i64: 1, 2>}, {transform_indices = @transform_12, window_bounds = array<i64: 8, 2>}]} {
    %c0 = arith.constant 0 : index
    %c0_0 = arith.constant 0 : index
    %0 = vector.load %arg1[%c0, %c0_0] : memref<8x16xf32, #tpu.memory_space<vmem>>, vector<8x16xf32>
    %1 = arith.truncf %0 : vector<8x16xf32> to vector<8x16xbf16>
    %c0_1 = arith.constant 0 : index
    %c0_2 = arith.constant 0 : index
    %2 = vector.load %arg2[%c0_1, %c0_2] : memref<8x8xf32, #tpu.memory_space<vmem>>, vector<8x8xf32>
    %3 = arith.truncf %2 : vector<8x8xf32> to vector<8x8xbf16>
    %c0_3 = arith.constant 0 : index
    %c0_4 = arith.constant 0 : index
    %4 = vector.load %arg3[%c0_3, %c0_4] : memref<16x256xbf16, #tpu.memory_space<vmem>>, vector<16x256xbf16>
    %cst = arith.constant dense<0.000000e+00> : vector<8x256xf32>
    %5 = tpu.matmul %1, %4, %cst {dimension_numbers = #tpu.dot_dimension_numbers<[1], [0], [0], [1], [0, 0, 1, 1], [], []>} : vector<8x16xbf16>, vector<16x256xbf16>, vector<8x256xf32> -> vector<8x256xf32>
    %c0_5 = arith.constant 0 : index
    %c0_6 = arith.constant 0 : index
    %6 = vector.load %arg4[%c0_5, %c0_6] : memref<8x256xbf16, #tpu.memory_space<vmem>>, vector<8x256xbf16>
    %cst_7 = arith.constant dense<0.000000e+00> : vector<8x256xf32>
    %7 = tpu.matmul %3, %6, %cst_7 {dimension_numbers = #tpu.dot_dimension_numbers<[1], [0], [0], [1], [0, 0, 1, 1], [], []>} : vector<8x8xbf16>, vector<8x256xbf16>, vector<8x256xf32> -> vector<8x256xf32>
    %8 = arith.addf %5, %7 : vector<8x256xf32>
    %c0_8 = arith.constant 0 : index
    %c0_9 = arith.constant 0 : index
    %9 = vector.load %arg5[%c0_8, %c0_9] : memref<1x256xf32, #tpu.memory_space<vmem>>, vector<1x256xf32>
    %10 = vector.broadcast %9 : vector<1x256xf32> to vector<8x256xf32>
    %11 = arith.addf %8, %10 : vector<8x256xf32>
    %cst_10 = arith.constant 2.000000e+01 : f32
    %12 = vector.broadcast %cst_10 : f32 to vector<8x256xf32>
    %13 = arith.minimumf %11, %12 : vector<8x256xf32>
    %14 = math.exp %13 : vector<8x256xf32>
    %cst_11 = arith.constant 2.000000e+00 : f32
    %15 = vector.broadcast %cst_11 : f32 to vector<8x256xf32>
    %16 = arith.addf %14, %15 : vector<8x256xf32>
    %17 = arith.mulf %14, %16 : vector<8x256xf32>
    %cst_12 = arith.constant 2.000000e+00 : f32
    %18 = vector.broadcast %cst_12 : f32 to vector<8x256xf32>
    %19 = arith.addf %17, %18 : vector<8x256xf32>
    %20 = tpu.reciprocal %19 {approx = true} : vector<8x256xf32> -> vector<8x256xf32>
    %cst_13 = arith.constant 2.000000e+00 : f32
    %21 = vector.broadcast %cst_13 : f32 to vector<8x256xf32>
    %22 = arith.mulf %21, %20 : vector<8x256xf32>
    %cst_14 = arith.constant 1.000000e+00 : f32
    %23 = vector.broadcast %cst_14 : f32 to vector<8x256xf32>
    %24 = arith.subf %23, %22 : vector<8x256xf32>
    %25 = arith.mulf %11, %24 : vector<8x256xf32>
    %26 = vector.extract_strided_slice %25 {offsets = [0, 0], sizes = [8, 128], strides = [1, 1]} : vector<8x256xf32> to vector<8x128xf32>
    %27 = arith.truncf %26 : vector<8x128xf32> to vector<8x128xbf16>
    %28 = vector.extract_strided_slice %25 {offsets = [0, 128], sizes = [8, 128], strides = [1, 1]} : vector<8x256xf32> to vector<8x128xf32>
    %29 = arith.truncf %28 : vector<8x128xf32> to vector<8x128xbf16>
    %c0_15 = arith.constant 0 : index
    %c0_16 = arith.constant 0 : index
    %30 = vector.load %arg6[%c0_15, %c0_16] : memref<128x128xbf16, #tpu.memory_space<vmem>>, vector<128x128xbf16>
    %cst_17 = arith.constant dense<0.000000e+00> : vector<8x128xf32>
    %31 = tpu.matmul %27, %30, %cst_17 {dimension_numbers = #tpu.dot_dimension_numbers<[1], [0], [0], [1], [0, 0, 1, 1], [], []>} : vector<8x128xbf16>, vector<128x128xbf16>, vector<8x128xf32> -> vector<8x128xf32>
    %c0_18 = arith.constant 0 : index
    %c0_19 = arith.constant 0 : index
    %32 = vector.load %arg7[%c0_18, %c0_19] : memref<1x128xf32, #tpu.memory_space<vmem>>, vector<1x128xf32>
    %33 = vector.broadcast %32 : vector<1x128xf32> to vector<8x128xf32>
    %34 = arith.addf %31, %33 : vector<8x128xf32>
    %cst_20 = arith.constant 2.000000e+01 : f32
    %35 = vector.broadcast %cst_20 : f32 to vector<8x128xf32>
    %36 = arith.minimumf %34, %35 : vector<8x128xf32>
    %37 = math.exp %36 : vector<8x128xf32>
    %cst_21 = arith.constant 2.000000e+00 : f32
    %38 = vector.broadcast %cst_21 : f32 to vector<8x128xf32>
    %39 = arith.addf %37, %38 : vector<8x128xf32>
    %40 = arith.mulf %37, %39 : vector<8x128xf32>
    %cst_22 = arith.constant 2.000000e+00 : f32
    %41 = vector.broadcast %cst_22 : f32 to vector<8x128xf32>
    %42 = arith.addf %40, %41 : vector<8x128xf32>
    %43 = tpu.reciprocal %42 {approx = true} : vector<8x128xf32> -> vector<8x128xf32>
    %cst_23 = arith.constant 2.000000e+00 : f32
    %44 = vector.broadcast %cst_23 : f32 to vector<8x128xf32>
    %45 = arith.mulf %44, %43 : vector<8x128xf32>
    %cst_24 = arith.constant 1.000000e+00 : f32
    %46 = vector.broadcast %cst_24 : f32 to vector<8x128xf32>
    %47 = arith.subf %46, %45 : vector<8x128xf32>
    %48 = arith.mulf %34, %47 : vector<8x128xf32>
    %c0_25 = arith.constant 0 : index
    %c0_26 = arith.constant 0 : index
    %49 = vector.load %arg8[%c0_25, %c0_26] : memref<128x128xbf16, #tpu.memory_space<vmem>>, vector<128x128xbf16>
    %cst_27 = arith.constant dense<0.000000e+00> : vector<8x128xf32>
    %50 = tpu.matmul %29, %49, %cst_27 {dimension_numbers = #tpu.dot_dimension_numbers<[1], [0], [0], [1], [0, 0, 1, 1], [], []>} : vector<8x128xbf16>, vector<128x128xbf16>, vector<8x128xf32> -> vector<8x128xf32>
    %c0_28 = arith.constant 0 : index
    %c0_29 = arith.constant 0 : index
    %51 = vector.load %arg9[%c0_28, %c0_29] : memref<1x128xf32, #tpu.memory_space<vmem>>, vector<1x128xf32>
    %52 = vector.broadcast %51 : vector<1x128xf32> to vector<8x128xf32>
    %53 = arith.addf %50, %52 : vector<8x128xf32>
    %cst_30 = arith.constant 2.000000e+01 : f32
    %54 = vector.broadcast %cst_30 : f32 to vector<8x128xf32>
    %55 = arith.minimumf %53, %54 : vector<8x128xf32>
    %56 = math.exp %55 : vector<8x128xf32>
    %cst_31 = arith.constant 2.000000e+00 : f32
    %57 = vector.broadcast %cst_31 : f32 to vector<8x128xf32>
    %58 = arith.addf %56, %57 : vector<8x128xf32>
    %59 = arith.mulf %56, %58 : vector<8x128xf32>
    %cst_32 = arith.constant 2.000000e+00 : f32
    %60 = vector.broadcast %cst_32 : f32 to vector<8x128xf32>
    %61 = arith.addf %59, %60 : vector<8x128xf32>
    %62 = tpu.reciprocal %61 {approx = true} : vector<8x128xf32> -> vector<8x128xf32>
    %cst_33 = arith.constant 2.000000e+00 : f32
    %63 = vector.broadcast %cst_33 : f32 to vector<8x128xf32>
    %64 = arith.mulf %63, %62 : vector<8x128xf32>
    %cst_34 = arith.constant 1.000000e+00 : f32
    %65 = vector.broadcast %cst_34 : f32 to vector<8x128xf32>
    %66 = arith.subf %65, %64 : vector<8x128xf32>
    %67 = arith.mulf %53, %66 : vector<8x128xf32>
    %68 = arith.truncf %48 : vector<8x128xf32> to vector<8x128xbf16>
    %c0_35 = arith.constant 0 : index
    %c0_36 = arith.constant 0 : index
    %69 = vector.load %arg10[%c0_35, %c0_36] : memref<128x2xbf16, #tpu.memory_space<vmem>>, vector<128x2xbf16>
    %cst_37 = arith.constant dense<0.000000e+00> : vector<8x2xf32>
    %70 = tpu.matmul %68, %69, %cst_37 {dimension_numbers = #tpu.dot_dimension_numbers<[1], [0], [0], [1], [0, 0, 1, 1], [], []>} : vector<8x128xbf16>, vector<128x2xbf16>, vector<8x2xf32> -> vector<8x2xf32>
    %71 = arith.truncf %67 : vector<8x128xf32> to vector<8x128xbf16>
    %c0_38 = arith.constant 0 : index
    %c0_39 = arith.constant 0 : index
    %72 = vector.load %arg11[%c0_38, %c0_39] : memref<128x2xbf16, #tpu.memory_space<vmem>>, vector<128x2xbf16>
    %cst_40 = arith.constant dense<0.000000e+00> : vector<8x2xf32>
    %73 = tpu.matmul %71, %72, %cst_40 {dimension_numbers = #tpu.dot_dimension_numbers<[1], [0], [0], [1], [0, 0, 1, 1], [], []>} : vector<8x128xbf16>, vector<128x2xbf16>, vector<8x2xf32> -> vector<8x2xf32>
    %74 = arith.addf %70, %73 : vector<8x2xf32>
    %c0_41 = arith.constant 0 : index
    %c0_42 = arith.constant 0 : index
    %75 = vector.load %arg12[%c0_41, %c0_42] : memref<1x2xf32, #tpu.memory_space<vmem>>, vector<1x2xf32>
    %76 = vector.broadcast %75 : vector<1x2xf32> to vector<8x2xf32>
    %77 = arith.addf %74, %76 : vector<8x2xf32>
    %c0_43 = arith.constant 0 : index
    %c0_44 = arith.constant 0 : index
    %78 = vector.load %arg13[%c0_43, %c0_44] : memref<8x2xf32, #tpu.memory_space<vmem>>, vector<8x2xf32>
    tpu.vector_store %arg13[%c0_43, %c0_44], %77 {strides = array<i32>} : memref<8x2xf32, #tpu.memory_space<vmem>>, vector<8x2xf32>,
    return
  }
  func.func @transform_0(%arg0: i32) -> (i32, i32) {
    %c0_i32 = arith.constant 0 : i32
    %c0_i32_0 = arith.constant 0 : i32
    return %arg0, %c0_i32 : i32, i32
  }
  func.func @transform_1(%arg0: i32) -> (i32, i32) {
    %c0_i32 = arith.constant 0 : i32
    %c0_i32_0 = arith.constant 0 : i32
    return %arg0, %c0_i32 : i32, i32
  }
  func.func @transform_2(%arg0: i32) -> (i32, i32) {
    %c0_i32 = arith.constant 0 : i32
    %c0_i32_0 = arith.constant 0 : i32
    %c0_i32_1 = arith.constant 0 : i32
    return %c0_i32, %c0_i32_0 : i32, i32
  }
  func.func @transform_3(%arg0: i32) -> (i32, i32) {
    %c0_i32 = arith.constant 0 : i32
    %c0_i32_0 = arith.constant 0 : i32
    %c0_i32_1 = arith.constant 0 : i32
    return %c0_i32, %c0_i32_0 : i32, i32
  }
  func.func @transform_4(%arg0: i32) -> (i32, i32) {
    %c0_i32 = arith.constant 0 : i32
    %c0_i32_0 = arith.constant 0 : i32
    %c0_i32_1 = arith.constant 0 : i32
    return %c0_i32, %c0_i32_0 : i32, i32
  }
  func.func @transform_5(%arg0: i32) -> (i32, i32) {
    %c0_i32 = arith.constant 0 : i32
    %c0_i32_0 = arith.constant 0 : i32
    %c0_i32_1 = arith.constant 0 : i32
    return %c0_i32, %c0_i32_0 : i32, i32
  }
  func.func @transform_6(%arg0: i32) -> (i32, i32) {
    %c0_i32 = arith.constant 0 : i32
    %c0_i32_0 = arith.constant 0 : i32
    %c0_i32_1 = arith.constant 0 : i32
    return %c0_i32, %c0_i32_0 : i32, i32
  }
  func.func @transform_7(%arg0: i32) -> (i32, i32) {
    %c0_i32 = arith.constant 0 : i32
    %c0_i32_0 = arith.constant 0 : i32
    %c0_i32_1 = arith.constant 0 : i32
    return %c0_i32, %c0_i32_0 : i32, i32
  }
  func.func @transform_8(%arg0: i32) -> (i32, i32) {
    %c0_i32 = arith.constant 0 : i32
    %c0_i32_0 = arith.constant 0 : i32
    %c0_i32_1 = arith.constant 0 : i32
    return %c0_i32, %c0_i32_0 : i32, i32
  }
  func.func @transform_9(%arg0: i32) -> (i32, i32) {
    %c0_i32 = arith.constant 0 : i32
    %c0_i32_0 = arith.constant 0 : i32
    %c0_i32_1 = arith.constant 0 : i32
    return %c0_i32, %c0_i32_0 : i32, i32
  }
  func.func @transform_10(%arg0: i32) -> (i32, i32) {
    %c0_i32 = arith.constant 0 : i32
    %c0_i32_0 = arith.constant 0 : i32
    %c0_i32_1 = arith.constant 0 : i32
    return %c0_i32, %c0_i32_0 : i32, i32
  }
  func.func @transform_11(%arg0: i32) -> (i32, i32) {
    %c0_i32 = arith.constant 0 : i32
    %c0_i32_0 = arith.constant 0 : i32
    %c0_i32_1 = arith.constant 0 : i32
    return %c0_i32, %c0_i32_0 : i32, i32
  }
  func.func @transform_12(%arg0: i32) -> (i32, i32) {
    %c0_i32 = arith.constant 0 : i32
    %c0_i32_0 = arith.constant 0 : i32
    return %arg0, %c0_i32 : i32, i32
  }
}

</mosaic_0001>

<llo_original>
// kernel: double_critic_forward.1
$region0: #{double_critic_forward.1}
  #allocation0 [shape = 'u32[]', space=smem, size = 0x4, offset = 0x4, fixed_abs, tag = 'smem constant byte address 0x4 - core index']
  #allocation1 [shape = 'u32[144,128]{1,0:T(1,128)}', space=vmem, size = 0x12000, scoped, tag = 'internal scratch']
  %s0 = inlined_call_operand.hbm [shape: f32[8,16], index: 0, kind: input, shape index: {}]
  %s1 = inlined_call_operand.hbm [shape: f32[8,8], index: 1, kind: input, shape index: {}]
  %s2 = inlined_call_operand.hbm [shape: bf16[16,256], index: 2, kind: input, shape index: {}]
  %s3 = inlined_call_operand.hbm [shape: bf16[8,256], index: 3, kind: input, shape index: {}]
  %s4 = inlined_call_operand.hbm [shape: f32[1,256], index: 4, kind: input, shape index: {}]
  %s5 = inlined_call_operand.hbm [shape: bf16[128,128], index: 5, kind: input, shape index: {}]
  %s6 = inlined_call_operand.hbm [shape: f32[1,128], index: 6, kind: input, shape index: {}]
  %s7 = inlined_call_operand.hbm [shape: bf16[128,128], index: 7, kind: input, shape index: {}]
  %s8 = inlined_call_operand.hbm [shape: f32[1,128], index: 8, kind: input, shape index: {}]
  %s9 = inlined_call_operand.hbm [shape: bf16[128,2], index: 9, kind: input, shape index: {}]
  %s10 = inlined_call_operand.hbm [shape: bf16[128,2], index: 10, kind: input, shape index: {}]
  %s11 = inlined_call_operand.hbm [shape: f32[1,2], index: 11, kind: input, shape index: {}]
  %s12 = inlined_call_operand.hbm [shape: f32[8,2], index: 12, kind: output, shape index: {}]
  %s13 = sld [smem:[#allocation0]]
  $region106: #{double_critic_forward.1} parent=0
    _
  %s15 = ssub.s32 1, %s13
  %s16 = scalar_select 0, %s15, %s13
  $region1: #{double_critic_forward.1} parent=0
    #allocation2 [shape = 'u8[4096]{0}', space=vmem, size = 0x1000, scoped, tag = 'input window, operand 0, single buffered']
    #allocation3 [shape = 's32[1]{0}', space=sflag, size = 0x4, scoped, tag = 'scoped memory for double_critic_forward.1']
    #allocation4 [shape = 's32[1]{0}', space=sflag, size = 0x4, scoped, tag = 'scoped memory for double_critic_forward.1']
    #allocation5 [shape = 'u8[4096]{0}', space=vmem, size = 0x1000, scoped, tag = 'input window, operand 1, single buffered']
    #allocation6 [shape = 's32[1]{0}', space=sflag, size = 0x4, scoped, tag = 'scoped memory for double_critic_forward.1']
    #allocation7 [shape = 'u8[8192]{0}', space=vmem, size = 0x2000, scoped, tag = 'input window, operand 2, single buffered']
    #allocation8 [shape = 'u8[4096]{0}', space=vmem, size = 0x1000, scoped, tag = 'input window, operand 3, single buffered']
    #allocation9 [shape = 's32[1]{0}', space=sflag, size = 0x4, scoped, tag = 'scoped memory for double_critic_forward.1']
    #allocation10 [shape = 'u8[1024]{0}', space=vmem, size = 0x400, scoped, tag = 'input window, operand 4, single buffered']
    #allocation11 [shape = 'u8[32768]{0}', space=vmem, size = 0x8000, scoped, tag = 'input window, operand 5, single buffered']
    #allocation12 [shape = 's32[1]{0}', space=sflag, size = 0x4, scoped, tag = 'scoped memory for double_critic_forward.1']
    #allocation13 [shape = 'u8[512]{0}', space=vmem, size = 0x400, scoped, tag = 'input window, operand 6, single buffered']
    #allocation14 [shape = 'u8[32768]{0}', space=vmem, size = 0x8000, scoped, tag = 'input window, operand 7, single buffered']
    #allocation15 [shape = 's32[1]{0}', space=sflag, size = 0x4, scoped, tag = 'scoped memory for double_critic_forward.1']
    #allocation16 [shape = 'u8[512]{0}', space=vmem, size = 0x400, scoped, tag = 'input window, operand 8, single buffered']
    #allocation17 [shape = 'u8[32768]{0}', space=vmem, size = 0x8000, scoped, tag = 'input window, operand 9, single buffered']
    #allocation18 [shape = 's32[1]{0}', space=sflag, size = 0x4, scoped, tag = 'scoped memory for double_critic_forward.1']
    #allocation19 [shape = 'u8[32768]{0}', space=vmem, size = 0x8000, scoped, tag = 'input window, operand 10, single buffered']
    #allocation20 [shape = 'u8[512]{0}', space=vmem, size = 0x400, scoped, tag = 'input window, operand 11, single buffered']
    #allocation21 [shape = 's32[1]{0}', space=sflag, size = 0x4, scoped, tag = 'scoped memory for double_critic_forward.1']
    #allocation22 [shape = 'u8[4096]{0}', space=vmem, size = 0x1000, scoped, tag = 'output window, operand 0, single buffered']
    %17 = vsyncpa [#allocation3], 0
    %18 = vsyncpa [#allocation6], 0
    %19 = vsyncpa [#allocation9], 0
    %20 = vsyncpa [#allocation12], 0
    %21 = vsyncpa [#allocation15], 0
    %22 = vsyncpa [#allocation18], 0
    %23 = vsyncpa [#allocation21], 0
    %24 = vsyncpa [#allocation4], 0
    // Predicated region
    $region2: #{double_critic_forward.1} parent=1 // pred_check
      _
    $region3: #{double_critic_forward.1} parent=1 // pred_check_branch
      %26 = sbr.rel (0) target = $region5
    $region4: #{double_critic_forward.1} parent=1 // pred_region
      %s28 = ssub.s32 128, 128
      %29 = vsyncadd [#allocation3], %s28
      %s31 = sshll.u32 [#allocation2], 4
      %s32 = int_to_ptr.vmem [resolvable:$true] %s31
      %34 = dma.hbm_to_vmem [thread:$0]  %s0, 128, %s32, [#allocation3]
    $region5: #{double_critic_forward.1} parent=1 // pred_fallthru
      _
    // Predicated region
    $region6: #{double_critic_forward.1} parent=1 // pred_check
      _
    $region7: #{double_critic_forward.1} parent=1 // pred_check_branch
      %36 = sbr.rel (0) target = $region9
    $region8: #{double_critic_forward.1} parent=1 // pred_region
      %s38 = ssub.s32 128, 128
      %39 = vsyncadd [#allocation6], %s38
      %s41 = sshll.u32 [#allocation5], 4
      %s42 = int_to_ptr.vmem [resolvable:$true] %s41
      %44 = dma.hbm_to_vmem [thread:$0]  %s1, 128, %s42, [#allocation6]
    $region9: #{double_critic_forward.1} parent=1 // pred_fallthru
      _
    // Predicated region
    $region10: #{double_critic_forward.1} parent=1 // pred_check
      _
    $region11: #{double_critic_forward.1} parent=1 // pred_check_branch
      %46 = sbr.rel (0) target = $region13
    $region12: #{double_critic_forward.1} parent=1 // pred_region
      %s48 = ssub.s32 256, 256
      %49 = vsyncadd [#allocation6], %s48
      %s50 = sshll.u32 [#allocation7], 4
      %s51 = int_to_ptr.vmem [resolvable:$true] %s50
      %56 = dma.hbm_to_vmem [thread:$0]  %s2, 256, %s51, [#allocation6], 128, 128, 8
    $region13: #{double_critic_forward.1} parent=1 // pred_fallthru
      _
    // Predicated region
    $region14: #{double_critic_forward.1} parent=1 // pred_check
      _
    $region15: #{double_critic_forward.1} parent=1 // pred_check_branch
      %58 = sbr.rel (0) target = $region17
    $region16: #{double_critic_forward.1} parent=1 // pred_region
      %s60 = ssub.s32 128, 128
      %61 = vsyncadd [#allocation9], %s60
      %s63 = sshll.u32 [#allocation8], 4
      %s64 = int_to_ptr.vmem [resolvable:$true] %s63
      %66 = dma.hbm_to_vmem [thread:$0]  %s3, 128, %s64, [#allocation9]
    $region17: #{double_critic_forward.1} parent=1 // pred_fallthru
      _
    // Predicated region
    $region18: #{double_critic_forward.1} parent=1 // pred_check
      _
    $region19: #{double_critic_forward.1} parent=1 // pred_check_branch
      %68 = sbr.rel (0) target = $region21
    $region20: #{double_critic_forward.1} parent=1 // pred_region
      %s70 = ssub.s32 32, 32
      %71 = vsyncadd [#allocation9], %s70
      %s73 = sshll.u32 [#allocation10], 4
      %s74 = int_to_ptr.vmem [resolvable:$true] %s73
      %76 = dma.hbm_to_vmem [thread:$0]  %s4, 32, %s74, [#allocation9]
    $region21: #{double_critic_forward.1} parent=1 // pred_fallthru
      _
    // Predicated region
    $region22: #{double_critic_forward.1} parent=1 // pred_check
      _
    $region23: #{double_critic_forward.1} parent=1 // pred_check_branch
      %78 = sbr.rel (0) target = $region25
    $region24: #{double_critic_forward.1} parent=1 // pred_region
      %s80 = ssub.s32 1024, 1024
      %81 = vsyncadd [#allocation12], %s80
      %s82 = sshll.u32 [#allocation11], 4
      %s83 = int_to_ptr.vmem [resolvable:$true] %s82
      %88 = dma.hbm_to_vmem [thread:$0]  %s5, 1024, %s83, [#allocation12], 64, 64, 4
    $region25: #{double_critic_forward.1} parent=1 // pred_fallthru
      _
    // Predicated region
    $region26: #{double_critic_forward.1} parent=1 // pred_check
      _
    $region27: #{double_critic_forward.1} parent=1 // pred_check_branch
      %90 = sbr.rel (0) target = $region29
    $region28: #{double_critic_forward.1} parent=1 // pred_region
      %s92 = ssub.s32 16, 16
      %93 = vsyncadd [#allocation12], %s92
      %s95 = sshll.u32 [#allocation13], 4
      %s96 = int_to_ptr.vmem [resolvable:$true] %s95
      %98 = dma.hbm_to_vmem [thread:$0]  %s6, 16, %s96, [#allocation12]
    $region29: #{double_critic_forward.1} parent=1 // pred_fallthru
      _
    // Predicated region
    $region30: #{double_critic_forward.1} parent=1 // pred_check
      _
    $region31: #{double_critic_forward.1} parent=1 // pred_check_branch
      %100 = sbr.rel (0) target = $region33
    $region32: #{double_critic_forward.1} parent=1 // pred_region
      %s102 = ssub.s32 1024, 1024
      %103 = vsyncadd [#allocation15], %s102
      %s104 = sshll.u32 [#allocation14], 4
      %s105 = int_to_ptr.vmem [resolvable:$true] %s104
      %110 = dma.hbm_to_vmem [thread:$0]  %s7, 1024, %s105, [#allocation15], 64, 64, 4
    $region33: #{double_critic_forward.1} parent=1 // pred_fallthru
      _
    // Predicated region
    $region34: #{double_critic_forward.1} parent=1 // pred_check
      _
    $region35: #{double_critic_forward.1} parent=1 // pred_check_branch
      %112 = sbr.rel (0) target = $region37
    $region36: #{double_critic_forward.1} parent=1 // pred_region
      %s114 = ssub.s32 16, 16
      %115 = vsyncadd [#allocation15], %s114
      %s117 = sshll.u32 [#allocation16], 4
      %s118 = int_to_ptr.vmem [resolvable:$true] %s117
      %120 = dma.hbm_to_vmem [thread:$0]  %s8, 16, %s118, [#allocation15]
    $region37: #{double_critic_forward.1} parent=1 // pred_fallthru
      _
    // Predicated region
    $region38: #{double_critic_forward.1} parent=1 // pred_check
      _
    $region39: #{double_critic_forward.1} parent=1 // pred_check_branch
      %122 = sbr.rel (0) target = $region41
    $region40: #{double_critic_forward.1} parent=1 // pred_region
      %s124 = ssub.s32 1024, 1024
      %125 = vsyncadd [#allocation18], %s124
      %s126 = sshll.u32 [#allocation17], 4
      %s127 = int_to_ptr.vmem [resolvable:$true] %s126
      %132 = dma.hbm_to_vmem [thread:$0]  %s9, 1024, %s127, [#allocation18], 64, 64, 4
    $region41: #{double_critic_forward.1} parent=1 // pred_fallthru
      _
    // Predicated region
    $region42: #{double_critic_forward.1} parent=1 // pred_check
      _
    $region43: #{double_critic_forward.1} parent=1 // pred_check_branch
      %134 = sbr.rel (0) target = $region45
    $region44: #{double_critic_forward.1} parent=1 // pred_region
      %s136 = ssub.s32 1024, 1024
      %137 = vsyncadd [#allocation18], %s136
      %s138 = sshll.u32 [#allocation19], 4
      %s139 = int_to_ptr.vmem [resolvable:$true] %s138
      %144 = dma.hbm_to_vmem [thread:$0]  %s10, 1024, %s139, [#allocation18], 64, 64, 4
    $region45: #{double_critic_forward.1} parent=1 // pred_fallthru
      _
    // Predicated region
    $region46: #{double_critic_forward.1} parent=1 // pred_check
      _
    $region47: #{double_critic_forward.1} parent=1 // pred_check_branch
      %146 = sbr.rel (0) target = $region49
    $region48: #{double_critic_forward.1} parent=1 // pred_region
      %s148 = ssub.s32 16, 16
      %149 = vsyncadd [#allocation21], %s148
      %s151 = sshll.u32 [#allocation20], 4
      %s152 = int_to_ptr.vmem [resolvable:$true] %s151
      %154 = dma.hbm_to_vmem [thread:$0]  %s11, 16, %s152, [#allocation21]
    $region49: #{double_critic_forward.1} parent=1 // pred_fallthru
      _
    // Predicated region
    $region50: #{double_critic_forward.1} parent=1 // pred_check
      _
    $region51: #{double_critic_forward.1} parent=1 // pred_check_branch
      %156 = sbr.rel (0) target = $region53
    $region52: #{double_critic_forward.1} parent=1 // pred_region
      %157 = dma.done [#allocation3], 128
    $region53: #{double_critic_forward.1} parent=1 // pred_fallthru
      _
    // Predicated region
    $region54: #{double_critic_forward.1} parent=1 // pred_check
      _
    $region55: #{double_critic_forward.1} parent=1 // pred_check_branch
      %159 = sbr.rel (0) target = $region57
    $region56: #{double_critic_forward.1} parent=1 // pred_region
      %160 = dma.done [#allocation6], 128
    $region57: #{double_critic_forward.1} parent=1 // pred_fallthru
      _
    // Predicated region
    $region58: #{double_critic_forward.1} parent=1 // pred_check
      _
    $region59: #{double_critic_forward.1} parent=1 // pred_check_branch
      %162 = sbr.rel (0) target = $region61
    $region60: #{double_critic_forward.1} parent=1 // pred_region
      %163 = dma.done [#allocation6], 256
    $region61: #{double_critic_forward.1} parent=1 // pred_fallthru
      _
    // Predicated region
    $region62: #{double_critic_forward.1} parent=1 // pred_check
      _
    $region63: #{double_critic_forward.1} parent=1 // pred_check_branch
      %165 = sbr.rel (0) target = $region65
    $region64: #{double_critic_forward.1} parent=1 // pred_region
      %166 = dma.done [#allocation9], 128
    $region65: #{double_critic_forward.1} parent=1 // pred_fallthru
      _
    // Predicated region
    $region66: #{double_critic_forward.1} parent=1 // pred_check
      _
    $region67: #{double_critic_forward.1} parent=1 // pred_check_branch
      %168 = sbr.rel (0) target = $region69
    $region68: #{double_critic_forward.1} parent=1 // pred_region
      %169 = dma.done [#allocation9], 32
    $region69: #{double_critic_forward.1} parent=1 // pred_fallthru
      _
    // Predicated region
    $region70: #{double_critic_forward.1} parent=1 // pred_check
      _
    $region71: #{double_critic_forward.1} parent=1 // pred_check_branch
      %171 = sbr.rel (0) target = $region73
    $region72: #{double_critic_forward.1} parent=1 // pred_region
      %172 = dma.done [#allocation12], 1024
    $region73: #{double_critic_forward.1} parent=1 // pred_fallthru
      _
    // Predicated region
    $region74: #{double_critic_forward.1} parent=1 // pred_check
      _
    $region75: #{double_critic_forward.1} parent=1 // pred_check_branch
      %174 = sbr.rel (0) target = $region77
    $region76: #{double_critic_forward.1} parent=1 // pred_region
      %175 = dma.done [#allocation12], 16
    $region77: #{double_critic_forward.1} parent=1 // pred_fallthru
      _
    // Predicated region
    $region78: #{double_critic_forward.1} parent=1 // pred_check
      _
    $region79: #{double_critic_forward.1} parent=1 // pred_check_branch
      %177 = sbr.rel (0) target = $region81
    $region80: #{double_critic_forward.1} parent=1 // pred_region
      %178 = dma.done [#allocation15], 1024
    $region81: #{double_critic_forward.1} parent=1 // pred_fallthru
      _
    // Predicated region
    $region82: #{double_critic_forward.1} parent=1 // pred_check
      _
    $region83: #{double_critic_forward.1} parent=1 // pred_check_branch
      %180 = sbr.rel (0) target = $region85
    $region84: #{double_critic_forward.1} parent=1 // pred_region
      %181 = dma.done [#allocation15], 16
    $region85: #{double_critic_forward.1} parent=1 // pred_fallthru
      _
    // Predicated region
    $region86: #{double_critic_forward.1} parent=1 // pred_check
      _
    $region87: #{double_critic_forward.1} parent=1 // pred_check_branch
      %183 = sbr.rel (0) target = $region89
    $region88: #{double_critic_forward.1} parent=1 // pred_region
      %184 = dma.done [#allocation18], 1024
    $region89: #{double_critic_forward.1} parent=1 // pred_fallthru
      _
    // Predicated region
    $region90: #{double_critic_forward.1} parent=1 // pred_check
      _
    $region91: #{double_critic_forward.1} parent=1 // pred_check_branch
      %186 = sbr.rel (0) target = $region93
    $region92: #{double_critic_forward.1} parent=1 // pred_region
      %187 = dma.done [#allocation18], 1024
    $region93: #{double_critic_forward.1} parent=1 // pred_fallthru
      _
    // Predicated region
    $region94: #{double_critic_forward.1} parent=1 // pred_check
      _
    $region95: #{double_critic_forward.1} parent=1 // pred_check_branch
      %189 = sbr.rel (0) target = $region97
    $region96: #{double_critic_forward.1} parent=1 // pred_region
      %190 = dma.done [#allocation21], 16
    $region97: #{double_critic_forward.1} parent=1 // pred_fallthru
      _
    %v192 = vld [vmem:[#allocation2] sm:$0xff]
    %v193 = vpack.c.bf16 %v192, %v192
    %v194 = vld [vmem:[#allocation5] sm:$0xff]
    %v195 = vpack.c.bf16 %v194, %v194
    %v196 = vld [vmem:[#allocation7] sm:$0xff]
    %v197 = vld [vmem:[#allocation7 + $0x8] sm:$0xff]
    %v198 = vld [vmem:[#allocation8] sm:$0xff]
    %v200 = vunpack.c.l.b16 %v198
    %v201 = vunpack.c.h.b16 %v198
    %v202 = vpack.c.b16 %v200, %v200
    %v203 = vpack.c.b16 %v201, %v201
    %vm204 = vcmask 64512
    %v206 = vsel %vm204, %v195, 0
    %vm208 = vcmask 1043456
    %v210 = vsel %vm208, %v202, 0
    %v213 = vsel %vm208, %v203, 0
    %215 = vmatprep.subr.bf16.mxu0 %v213
    %216 = vmatpush1.bf16.msra.mxu0 %v210
    %217 = vmatprep.subr.bf16.mxu0 0
    %218 = vmatpush1.bf16.msra.mxu0 0
    %219 = vmatprep.subr.bf16.mxu0 0
    %220 = vmatpush1.bf16.msra.mxu0 0
    %221 = vmatprep.subr.bf16.mxu0 0
    %222 = vmatpush1.bf16.msra.mxu0 0
    %223 = vmatprep.subr.bf16.mxu0 0
    %224 = vmatpush1.bf16.msra.mxu0 0
    %225 = vmatprep.subr.bf16.mxu0 0
    %226 = vmatpush1.bf16.msra.mxu0 0
    %227 = vmatprep.subr.bf16.mxu0 0
    %228 = vmatpush1.bf16.msra.mxu0 0
    %229 = vmatprep.subr.bf16.mxu0 0
    %230 = vmatpush1.bf16.msra.mxu0 0
    %231 = vmatprep.subr.bf16.mxu0 0
    %232 = vmatpush1.bf16.msra.mxu0 0
    %233 = vmatprep.subr.bf16.mxu0 0
    %234 = vmatpush1.bf16.msra.mxu0 0
    %235 = vmatprep.subr.bf16.mxu0 0
    %236 = vmatpush1.bf16.msra.mxu0 0
    %237 = vmatprep.subr.bf16.mxu0 0
    %238 = vmatpush1.bf16.msra.mxu0 0
    %239 = vmatprep.subr.bf16.mxu0 0
    %240 = vmatpush1.bf16.msra.mxu0 0
    %241 = vmatprep.subr.bf16.mxu0 0
    %242 = vmatpush1.bf16.msra.mxu0 0
    %243 = vmatprep.subr.bf16.mxu0 0
    %244 = vmatpush1.bf16.msra.mxu0 0
    %245 = vmatprep.subr.bf16.mxu0 0
    %246 = vmatpush1.bf16.msra.mxu0 0
    %247 = vmatprep.mubr.bf16.mxu0 0
    %248 = vmatmul.mubr.bf16.gmra.mrb[0].mxu0 %v206
    %v249 = vpop.f32.mrb[0].mxu0
    %v250 = vadd.f32 0.0, %v249
    %v251 = vpop.f32.mrb[0].mxu0
    %v252 = vadd.f32 0.0, %v251
    %v253 = vpop.f32.mrb[0].mxu0
    %v254 = vpop.f32.mrb[0].mxu0
    %255 = vdwg.mxu0
    %v258 = vunpack.c.l.b16 %v196
    %v259 = vunpack.c.h.b16 %v196
    %v260 = vunpack.c.l.b16 %v197
    %v261 = vunpack.c.h.b16 %v197
    %v262 = vpack.c.b16 %v260, %v258
    %v263 = vpack.c.b16 %v261, %v259
    %vm266 = vcmask 130048
    %v268 = vsel %vm266, %v193, 0
    %270 = vmatprep.subr.bf16.mxu0 %v263
    %271 = vmatpush1.bf16.msra.mxu0 %v262
    %272 = vmatprep.subr.bf16.mxu0 0
    %273 = vmatpush1.bf16.msra.mxu0 0
    %274 = vmatprep.subr.bf16.mxu0 0
    %275 = vmatpush1.bf16.msra.mxu0 0
    %276 = vmatprep.subr.bf16.mxu0 0
    %277 = vmatpush1.bf16.msra.mxu0 0
    %278 = vmatprep.subr.bf16.mxu0 0
    %279 = vmatpush1.bf16.msra.mxu0 0
    %280 = vmatprep.subr.bf16.mxu0 0
    %281 = vmatpush1.bf16.msra.mxu0 0
    %282 = vmatprep.subr.bf16.mxu0 0
    %283 = vmatpush1.bf16.msra.mxu0 0
    %284 = vmatprep.subr.bf16.mxu0 0
    %285 = vmatpush1.bf16.msra.mxu0 0
    %286 = vmatprep.subr.bf16.mxu0 0
    %287 = vmatpush1.bf16.msra.mxu0 0
    %288 = vmatprep.subr.bf16.mxu0 0
    %289 = vmatpush1.bf16.msra.mxu0 0
    %290 = vmatprep.subr.bf16.mxu0 0
    %291 = vmatpush1.bf16.msra.mxu0 0
    %292 = vmatprep.subr.bf16.mxu0 0
    %293 = vmatpush1.bf16.msra.mxu0 0
    %294 = vmatprep.subr.bf16.mxu0 0
    %295 = vmatpush1.bf16.msra.mxu0 0
    %296 = vmatprep.subr.bf16.mxu0 0
    %297 = vmatpush1.bf16.msra.mxu0 0
    %298 = vmatprep.subr.bf16.mxu0 0
    %299 = vmatpush1.bf16.msra.mxu0 0
    %300 = vmatprep.subr.bf16.mxu0 0
    %301 = vmatpush1.bf16.msra.mxu0 0
    %302 = vmatprep.mubr.bf16.mxu0 0
    %303 = vmatmul.mubr.bf16.gmra.mrb[0].mxu0 %v268
    %v304 = vpop.f32.mrb[0].mxu0
    %v305 = vadd.f32 %v250, %v304
    %v306 = vpop.f32.mrb[0].mxu0
    %v307 = vadd.f32 %v252, %v306
    %v308 = vpop.f32.mrb[0].mxu0
    %v309 = vpop.f32.mrb[0].mxu0
    %310 = vdwg.mxu0
    %v311 = vld [vmem:[#allocation10] sm:$0x3]
    %v313 = vlaneseq
    %v314 = vshrl.u32 %v313, 7
    %v315 = vsub.s32 0, %v314
    %v316 = vrot.slane %v311, %v315
    %v317 = vlaneseq
    %v318 = vshrl.u32 %v317, 7
    %v319 = vsub.s32 1, %v318
    %v320 = vrot.slane %v311, %v319
    %v323 = vadd.f32 %v305, %v316
    %v324 = vadd.f32 %v307, %v320
    %v325 = vmin.f32 %v323, 20.0
    %v326 = vmin.f32 %v324, 20.0
    %v327 = vmul.f32 %v325, 1.442695
    %v328 = vpow.pop %v327
    %v329 = vmul.f32 %v326, 1.442695
    %v330 = vpow.pop %v329
    %v331 = vadd.f32 %v328, 2.0
    %v332 = vadd.f32 %v330, 2.0
    %v333 = vmul.f32 %v328, %v331
    %v334 = vmul.f32 %v330, %v332
    %v335 = vadd.f32 %v333, 2.0
    %v336 = vadd.f32 %v334, 2.0
    %v337 = vrcp.pop %v335
    %v338 = vrcp.pop %v336
    %v339 = vmul.f32 %v337, 2.0
    %v340 = vmul.f32 %v338, 2.0
    %v341 = vsub.f32 1.0, %v339
    %v342 = vsub.f32 1.0, %v340
    %v343 = vmul.f32 %v323, %v341
    %v344 = vmul.f32 %v324, %v342
    %v345 = vpack.c.bf16 %v343, %v343
    %v346 = vpack.c.bf16 %v344, %v344
    %v347 = vld [vmem:[#allocation11] sm:$0xf]
    %v348 = vld [vmem:[#allocation11 + $0x4] sm:$0xf]
    %v349 = vld [vmem:[#allocation11 + $0x8] sm:$0xf]
    %v350 = vld [vmem:[#allocation11 + $0xc] sm:$0xf]
    %v351 = vld [vmem:[#allocation11 + $0x10] sm:$0xf]
    %v352 = vld [vmem:[#allocation11 + $0x14] sm:$0xf]
    %v353 = vld [vmem:[#allocation11 + $0x18] sm:$0xf]
    %v354 = vld [vmem:[#allocation11 + $0x1c] sm:$0xf]
    %v355 = vld [vmem:[#allocation11 + $0x20] sm:$0xf]
    %v356 = vld [vmem:[#allocation11 + $0x24] sm:$0xf]
    %v357 = vld [vmem:[#allocation11 + $0x28] sm:$0xf]
    %v358 = vld [vmem:[#allocation11 + $0x2c] sm:$0xf]
    %v359 = vld [vmem:[#allocation11 + $0x30] sm:$0xf]
    %v360 = vld [vmem:[#allocation11 + $0x34] sm:$0xf]
    %v361 = vld [vmem:[#allocation11 + $0x38] sm:$0xf]
    %v362 = vld [vmem:[#allocation11 + $0x3c] sm:$0xf]
    %v363 = vld [vmem:[#allocation13] sm:$0x1]
    %v365 = vlaneseq
    %v366 = vshrl.u32 %v365, 7
    %v367 = vsub.s32 0, %v366
    %v368 = vrot.slane %v363, %v367
    %v386 = vunpack.c.l.b16 %v347
    %v387 = vunpack.c.l.b16 %v348
    %v388 = vunpack.c.l.b16 %v349
    %v389 = vunpack.c.l.b16 %v350
    %v390 = vunpack.c.l.b16 %v351
    %v391 = vunpack.c.l.b16 %v352
    %v392 = vunpack.c.l.b16 %v353
    %v393 = vunpack.c.l.b16 %v354
    %v394 = vunpack.c.l.b16 %v355
    %v395 = vunpack.c.l.b16 %v356
    %v396 = vunpack.c.l.b16 %v357
    %v397 = vunpack.c.l.b16 %v358
    %v398 = vunpack.c.l.b16 %v359
    %v399 = vunpack.c.l.b16 %v360
    %v400 = vunpack.c.l.b16 %v361
    %v401 = vunpack.c.l.b16 %v362
    %v402 = vpack.c.b16 %v387, %v386
    %v403 = vpack.c.b16 %v389, %v388
    %v404 = vpack.c.b16 %v391, %v390
    %v405 = vpack.c.b16 %v393, %v392
    %v406 = vpack.c.b16 %v395, %v394
    %v407 = vpack.c.b16 %v397, %v396
    %v408 = vpack.c.b16 %v399, %v398
    %v409 = vpack.c.b16 %v401, %v400
    %418 = vmatprep.subr.bf16.mxu0 0
    %419 = vmatpush1.bf16.msra.mxu0 %v402
    %420 = vmatprep.subr.bf16.mxu0 0
    %421 = vmatpush1.bf16.msra.mxu0 %v403
    %422 = vmatprep.subr.bf16.mxu0 0
    %423 = vmatpush1.bf16.msra.mxu0 %v404
    %424 = vmatprep.subr.bf16.mxu0 0
    %425 = vmatpush1.bf16.msra.mxu0 %v405
    %426 = vmatprep.subr.bf16.mxu0 0
    %427 = vmatpush1.bf16.msra.mxu0 %v406
    %428 = vmatprep.subr.bf16.mxu0 0
    %429 = vmatpush1.bf16.msra.mxu0 %v407
    %430 = vmatprep.subr.bf16.mxu0 0
    %431 = vmatpush1.bf16.msra.mxu0 %v408
    %432 = vmatprep.subr.bf16.mxu0 0
    %433 = vmatpush1.bf16.msra.mxu0 %v409
    %434 = vmatprep.subr.bf16.mxu0 0
    %435 = vmatpush1.bf16.msra.mxu0 0
    %436 = vmatprep.subr.bf16.mxu0 0
    %437 = vmatpush1.bf16.msra.mxu0 0
    %438 = vmatprep.subr.bf16.mxu0 0
    %439 = vmatpush1.bf16.msra.mxu0 0
    %440 = vmatprep.subr.bf16.mxu0 0
    %441 = vmatpush1.bf16.msra.mxu0 0
    %442 = vmatprep.subr.bf16.mxu0 0
    %443 = vmatpush1.bf16.msra.mxu0 0
    %444 = vmatprep.subr.bf16.mxu0 0
    %445 = vmatpush1.bf16.msra.mxu0 0
    %446 = vmatprep.subr.bf16.mxu0 0
    %447 = vmatpush1.bf16.msra.mxu0 0
    %448 = vmatprep.subr.bf16.mxu0 0
    %449 = vmatpush1.bf16.msra.mxu0 0
    %450 = vmatprep.mubr.bf16.mxu0 0
    %451 = vmatmul.mubr.bf16.gmra.mrb[0].mxu0 %v345
    %v452 = vpop.f32.mrb[0].mxu0
    %v453 = vadd.f32 %v368, %v452
    %v454 = vpop.f32.mrb[0].mxu0
    %v455 = vpop.f32.mrb[0].mxu0
    %v456 = vpop.f32.mrb[0].mxu0
    %457 = vdwg.mxu0
    %v458 = vmin.f32 %v453, 20.0
    %v459 = vmul.f32 %v458, 1.442695
    %v460 = vpow.pop %v459
    %v461 = vadd.f32 %v460, 2.0
    %v462 = vmul.f32 %v460, %v461
    %v463 = vadd.f32 %v462, 2.0
    %v464 = vrcp.pop %v463
    %v465 = vmul.f32 %v464, 2.0
    %v466 = vsub.f32 1.0, %v465
    %v467 = vmul.f32 %v453, %v466
    %v468 = vld [vmem:[#allocation14] sm:$0xf]
    %v469 = vld [vmem:[#allocation14 + $0x4] sm:$0xf]
    %v470 = vld [vmem:[#allocation14 + $0x8] sm:$0xf]
    %v471 = vld [vmem:[#allocation14 + $0xc] sm:$0xf]
    %v472 = vld [vmem:[#allocation14 + $0x10] sm:$0xf]
    %v473 = vld [vmem:[#allocation14 + $0x14] sm:$0xf]
    %v474 = vld [vmem:[#allocation14 + $0x18] sm:$0xf]
    %v475 = vld [vmem:[#allocation14 + $0x1c] sm:$0xf]
    %v476 = vld [vmem:[#allocation14 + $0x20] sm:$0xf]
    %v477 = vld [vmem:[#allocation14 + $0x24] sm:$0xf]
    %v478 = vld [vmem:[#allocation14 + $0x28] sm:$0xf]
    %v479 = vld [vmem:[#allocation14 + $0x2c] sm:$0xf]
    %v480 = vld [vmem:[#allocation14 + $0x30] sm:$0xf]
    %v481 = vld [vmem:[#allocation14 + $0x34] sm:$0xf]
    %v482 = vld [vmem:[#allocation14 + $0x38] sm:$0xf]
    %v483 = vld [vmem:[#allocation14 + $0x3c] sm:$0xf]
    %v484 = vld [vmem:[#allocation16] sm:$0x1]
    %v486 = vlaneseq
    %v487 = vshrl.u32 %v486, 7
    %v488 = vsub.s32 0, %v487
    %v489 = vrot.slane %v484, %v488
    %v507 = vunpack.c.l.b16 %v468
    %v508 = vunpack.c.l.b16 %v469
    %v509 = vunpack.c.l.b16 %v470
    %v510 = vunpack.c.l.b16 %v471
    %v511 = vunpack.c.l.b16 %v472
    %v512 = vunpack.c.l.b16 %v473
    %v513 = vunpack.c.l.b16 %v474
    %v514 = vunpack.c.l.b16 %v475
    %v515 = vunpack.c.l.b16 %v476
    %v516 = vunpack.c.l.b16 %v477
    %v517 = vunpack.c.l.b16 %v478
    %v518 = vunpack.c.l.b16 %v479
    %v519 = vunpack.c.l.b16 %v480
    %v520 = vunpack.c.l.b16 %v481
    %v521 = vunpack.c.l.b16 %v482
    %v522 = vunpack.c.l.b16 %v483
    %v523 = vpack.c.b16 %v508, %v507
    %v524 = vpack.c.b16 %v510, %v509
    %v525 = vpack.c.b16 %v512, %v511
    %v526 = vpack.c.b16 %v514, %v513
    %v527 = vpack.c.b16 %v516, %v515
    %v528 = vpack.c.b16 %v518, %v517
    %v529 = vpack.c.b16 %v520, %v519
    %v530 = vpack.c.b16 %v522, %v521
    %539 = vmatprep.subr.bf16.mxu0 0
    %540 = vmatpush1.bf16.msra.mxu0 %v523
    %541 = vmatprep.subr.bf16.mxu0 0
    %542 = vmatpush1.bf16.msra.mxu0 %v524
    %543 = vmatprep.subr.bf16.mxu0 0
    %544 = vmatpush1.bf16.msra.mxu0 %v525
    %545 = vmatprep.subr.bf16.mxu0 0
    %546 = vmatpush1.bf16.msra.mxu0 %v526
    %547 = vmatprep.subr.bf16.mxu0 0
    %548 = vmatpush1.bf16.msra.mxu0 %v527
    %549 = vmatprep.subr.bf16.mxu0 0
    %550 = vmatpush1.bf16.msra.mxu0 %v528
    %551 = vmatprep.subr.bf16.mxu0 0
    %552 = vmatpush1.bf16.msra.mxu0 %v529
    %553 = vmatprep.subr.bf16.mxu0 0
    %554 = vmatpush1.bf16.msra.mxu0 %v530
    %555 = vmatprep.subr.bf16.mxu0 0
    %556 = vmatpush1.bf16.msra.mxu0 0
    %557 = vmatprep.subr.bf16.mxu0 0
    %558 = vmatpush1.bf16.msra.mxu0 0
    %559 = vmatprep.subr.bf16.mxu0 0
    %560 = vmatpush1.bf16.msra.mxu0 0
    %561 = vmatprep.subr.bf16.mxu0 0
    %562 = vmatpush1.bf16.msra.mxu0 0
    %563 = vmatprep.subr.bf16.mxu0 0
    %564 = vmatpush1.bf16.msra.mxu0 0
    %565 = vmatprep.subr.bf16.mxu0 0
    %566 = vmatpush1.bf16.msra.mxu0 0
    %567 = vmatprep.subr.bf16.mxu0 0
    %568 = vmatpush1.bf16.msra.mxu0 0
    %569 = vmatprep.subr.bf16.mxu0 0
    %570 = vmatpush1.bf16.msra.mxu0 0
    %571 = vmatprep.mubr.bf16.mxu0 0
    %572 = vmatmul.mubr.bf16.gmra.mrb[0].mxu0 %v346
    %v573 = vpop.f32.mrb[0].mxu0
    %v574 = vadd.f32 %v489, %v573
    %v575 = vpop.f32.mrb[0].mxu0
    %v576 = vpop.f32.mrb[0].mxu0
    %v577 = vpop.f32.mrb[0].mxu0
    %578 = vdwg.mxu0
    %v579 = vmin.f32 %v574, 20.0
    %v580 = vmul.f32 %v579, 1.442695
    %v581 = vpow.pop %v580
    %v582 = vadd.f32 %v581, 2.0
    %v583 = vmul.f32 %v581, %v582
    %v584 = vadd.f32 %v583, 2.0
    %v585 = vrcp.pop %v584
    %v586 = vmul.f32 %v585, 2.0
    %v587 = vsub.f32 1.0, %v586
    %v588 = vmul.f32 %v574, %v587
    %v589 = vpack.c.bf16 %v467, %v467
    %v590 = vld [vmem:[#allocation17] sm:$0xf]
    %v591 = vld [vmem:[#allocation17 + $0x4] sm:$0xf]
    %v592 = vld [vmem:[#allocation17 + $0x8] sm:$0xf]
    %v593 = vld [vmem:[#allocation17 + $0xc] sm:$0xf]
    %v594 = vld [vmem:[#allocation17 + $0x10] sm:$0xf]
    %v595 = vld [vmem:[#allocation17 + $0x14] sm:$0xf]
    %v596 = vld [vmem:[#allocation17 + $0x18] sm:$0xf]
    %v597 = vld [vmem:[#allocation17 + $0x1c] sm:$0xf]
    %v598 = vld [vmem:[#allocation17 + $0x20] sm:$0xf]
    %v599 = vld [vmem:[#allocation17 + $0x24] sm:$0xf]
    %v600 = vld [vmem:[#allocation17 + $0x28] sm:$0xf]
    %v601 = vld [vmem:[#allocation17 + $0x2c] sm:$0xf]
    %v602 = vld [vmem:[#allocation17 + $0x30] sm:$0xf]
    %v603 = vld [vmem:[#allocation17 + $0x34] sm:$0xf]
    %v604 = vld [vmem:[#allocation17 + $0x38] sm:$0xf]
    %v605 = vld [vmem:[#allocation17 + $0x3c] sm:$0xf]
    %v606 = vpack.c.bf16 %v588, %v588
    %v607 = vld [vmem:[#allocation19] sm:$0xf]
    %v608 = vld [vmem:[#allocation19 + $0x4] sm:$0xf]
    %v609 = vld [vmem:[#allocation19 + $0x8] sm:$0xf]
    %v610 = vld [vmem:[#allocation19 + $0xc] sm:$0xf]
    %v611 = vld [vmem:[#allocation19 + $0x10] sm:$0xf]
    %v612 = vld [vmem:[#allocation19 + $0x14] sm:$0xf]
    %v613 = vld [vmem:[#allocation19 + $0x18] sm:$0xf]
    %v614 = vld [vmem:[#allocation19 + $0x1c] sm:$0xf]
    %v615 = vld [vmem:[#allocation19 + $0x20] sm:$0xf]
    %v616 = vld [vmem:[#allocation19 + $0x24] sm:$0xf]
    %v617 = vld [vmem:[#allocation19 + $0x28] sm:$0xf]
    %v618 = vld [vmem:[#allocation19 + $0x2c] sm:$0xf]
    %v619 = vld [vmem:[#allocation19 + $0x30] sm:$0xf]
    %v620 = vld [vmem:[#allocation19 + $0x34] sm:$0xf]
    %v621 = vld [vmem:[#allocation19 + $0x38] sm:$0xf]
    %v622 = vld [vmem:[#allocation19 + $0x3c] sm:$0xf]
    %v639 = vunpack.c.l.b16 %v607
    %v640 = vunpack.c.l.b16 %v608
    %v641 = vunpack.c.l.b16 %v609
    %v642 = vunpack.c.l.b16 %v610
    %v643 = vunpack.c.l.b16 %v611
    %v644 = vunpack.c.l.b16 %v612
    %v645 = vunpack.c.l.b16 %v613
    %v646 = vunpack.c.l.b16 %v614
    %v647 = vunpack.c.l.b16 %v615
    %v648 = vunpack.c.l.b16 %v616
    %v649 = vunpack.c.l.b16 %v617
    %v650 = vunpack.c.l.b16 %v618
    %v651 = vunpack.c.l.b16 %v619
    %v652 = vunpack.c.l.b16 %v620
    %v653 = vunpack.c.l.b16 %v621
    %v654 = vunpack.c.l.b16 %v622
    %v655 = vpack.c.b16 %v640, %v639
    %v656 = vpack.c.b16 %v642, %v641
    %v657 = vpack.c.b16 %v644, %v643
    %v658 = vpack.c.b16 %v646, %v645
    %v659 = vpack.c.b16 %v648, %v647
    %v660 = vpack.c.b16 %v650, %v649
    %v661 = vpack.c.b16 %v652, %v651
    %v662 = vpack.c.b16 %v654, %v653
    %671 = vmatprep.subr.bf16.mxu0 0
    %672 = vmatpush1.bf16.msra.mxu0 %v655
    %673 = vmatprep.subr.bf16.mxu0 0
    %674 = vmatpush1.bf16.msra.mxu0 %v656
    %675 = vmatprep.subr.bf16.mxu0 0
    %676 = vmatpush1.bf16.msra.mxu0 %v657
    %677 = vmatprep.subr.bf16.mxu0 0
    %678 = vmatpush1.bf16.msra.mxu0 %v658
    %679 = vmatprep.subr.bf16.mxu0 0
    %680 = vmatpush1.bf16.msra.mxu0 %v659
    %681 = vmatprep.subr.bf16.mxu0 0
    %682 = vmatpush1.bf16.msra.mxu0 %v660
    %683 = vmatprep.subr.bf16.mxu0 0
    %684 = vmatpush1.bf16.msra.mxu0 %v661
    %685 = vmatprep.subr.bf16.mxu0 0
    %686 = vmatpush1.bf16.msra.mxu0 %v662
    %687 = vmatprep.subr.bf16.mxu0 0
    %688 = vmatpush1.bf16.msra.mxu0 0
    %689 = vmatprep.subr.bf16.mxu0 0
    %690 = vmatpush1.bf16.msra.mxu0 0
    %691 = vmatprep.subr.bf16.mxu0 0
    %692 = vmatpush1.bf16.msra.mxu0 0
    %693 = vmatprep.subr.bf16.mxu0 0
    %694 = vmatpush1.bf16.msra.mxu0 0
    %695 = vmatprep.subr.bf16.mxu0 0
    %696 = vmatpush1.bf16.msra.mxu0 0
    %697 = vmatprep.subr.bf16.mxu0 0
    %698 = vmatpush1.bf16.msra.mxu0 0
    %699 = vmatprep.subr.bf16.mxu0 0
    %700 = vmatpush1.bf16.msra.mxu0 0
    %701 = vmatprep.subr.bf16.mxu0 0
    %702 = vmatpush1.bf16.msra.mxu0 0
    %703 = vmatprep.mubr.bf16.mxu0 0
    %704 = vmatmul.mubr.bf16.gmra.mrb[0].mxu0 %v606
    %v705 = vpop.f32.mrb[0].mxu0
    %v706 = vadd.f32 0.0, %v705
    %v707 = vpop.f32.mrb[0].mxu0
    %v708 = vpop.f32.mrb[0].mxu0
    %v709 = vpop.f32.mrb[0].mxu0
    %710 = vdwg.mxu0
    %v727 = vunpack.c.l.b16 %v590
    %v728 = vunpack.c.l.b16 %v591
    %v729 = vunpack.c.l.b16 %v592
    %v730 = vunpack.c.l.b16 %v593
    %v731 = vunpack.c.l.b16 %v594
    %v732 = vunpack.c.l.b16 %v595
    %v733 = vunpack.c.l.b16 %v596
    %v734 = vunpack.c.l.b16 %v597
    %v735 = vunpack.c.l.b16 %v598
    %v736 = vunpack.c.l.b16 %v599
    %v737 = vunpack.c.l.b16 %v600
    %v738 = vunpack.c.l.b16 %v601
    %v739 = vunpack.c.l.b16 %v602
    %v740 = vunpack.c.l.b16 %v603
    %v741 = vunpack.c.l.b16 %v604
    %v742 = vunpack.c.l.b16 %v605
    %v743 = vpack.c.b16 %v728, %v727
    %v744 = vpack.c.b16 %v730, %v729
    %v745 = vpack.c.b16 %v732, %v731
    %v746 = vpack.c.b16 %v734, %v733
    %v747 = vpack.c.b16 %v736, %v735
    %v748 = vpack.c.b16 %v738, %v737
    %v749 = vpack.c.b16 %v740, %v739
    %v750 = vpack.c.b16 %v742, %v741
    %759 = vmatprep.subr.bf16.mxu0 0
    %760 = vmatpush1.bf16.msra.mxu0 %v743
    %761 = vmatprep.subr.bf16.mxu0 0
    %762 = vmatpush1.bf16.msra.mxu0 %v744
    %763 = vmatprep.subr.bf16.mxu0 0
    %764 = vmatpush1.bf16.msra.mxu0 %v745
    %765 = vmatprep.subr.bf16.mxu0 0
    %766 = vmatpush1.bf16.msra.mxu0 %v746
    %767 = vmatprep.subr.bf16.mxu0 0
    %768 = vmatpush1.bf16.msra.mxu0 %v747
    %769 = vmatprep.subr.bf16.mxu0 0
    %770 = vmatpush1.bf16.msra.mxu0 %v748
    %771 = vmatprep.subr.bf16.mxu0 0
    %772 = vmatpush1.bf16.msra.mxu0 %v749
    %773 = vmatprep.subr.bf16.mxu0 0
    %774 = vmatpush1.bf16.msra.mxu0 %v750
    %775 = vmatprep.subr.bf16.mxu0 0
    %776 = vmatpush1.bf16.msra.mxu0 0
    %777 = vmatprep.subr.bf16.mxu0 0
    %778 = vmatpush1.bf16.msra.mxu0 0
    %779 = vmatprep.subr.bf16.mxu0 0
    %780 = vmatpush1.bf16.msra.mxu0 0
    %781 = vmatprep.subr.bf16.mxu0 0
    %782 = vmatpush1.bf16.msra.mxu0 0
    %783 = vmatprep.subr.bf16.mxu0 0
    %784 = vmatpush1.bf16.msra.mxu0 0
    %785 = vmatprep.subr.bf16.mxu0 0
    %786 = vmatpush1.bf16.msra.mxu0 0
    %787 = vmatprep.subr.bf16.mxu0 0
    %788 = vmatpush1.bf16.msra.mxu0 0
    %789 = vmatprep.subr.bf16.mxu0 0
    %790 = vmatpush1.bf16.msra.mxu0 0
    %791 = vmatprep.mubr.bf16.mxu0 0
    %792 = vmatmul.mubr.bf16.gmra.mrb[0].mxu0 %v589
    %v793 = vpop.f32.mrb[0].mxu0
    %v794 = vadd.f32 %v706, %v793
    %v795 = vpop.f32.mrb[0].mxu0
    %v796 = vpop.f32.mrb[0].mxu0
    %v797 = vpop.f32.mrb[0].mxu0
    %798 = vdwg.mxu0
    %v799 = vld [vmem:[#allocation20] sm:$0x1]
    %v801 = vlaneseq
    %v802 = vshrl.u32 %v801, 7
    %v803 = vsub.s32 0, %v802
    %v804 = vrot.slane %v799, %v803
    %v806 = vadd.f32 %v794, %v804
    %vm807 = vcmask 15360
    %808 = vst.msk [vmem:[#allocation22] sm:$0xff] %vm807, %v806
    // Predicated region
    $region98: #{double_critic_forward.1} parent=1 // pred_check
      _
    $region99: #{double_critic_forward.1} parent=1 // pred_check_branch
      %810 = sbr.rel (0) target = $region101
    $region100: #{double_critic_forward.1} parent=1 // pred_region
      %s812 = ssub.s32 128, 128
      %813 = vsyncadd [#allocation4], %s812
      %s815 = sshll.u32 [#allocation22], 4
      %s816 = int_to_ptr.vmem [resolvable:$true] %s815
      %818 = dma.vmem_to_hbm [thread:$0]  %s816, 128, %s12, [#allocation4]
    $region101: #{double_critic_forward.1} parent=1 // pred_fallthru
      _
    // Predicated region
    $region102: #{double_critic_forward.1} parent=1 // pred_check
      _
    $region103: #{double_critic_forward.1} parent=1 // pred_check_branch
      %820 = sbr.rel (0) target = $region105
    $region104: #{double_critic_forward.1} parent=1 // pred_region
      %821 = dma.done [#allocation4], 128
    $region105: #{double_critic_forward.1} parent=1 // pred_fallthru
      _
    %822 = vsyncpa [#allocation3], 1
    %823 = vsyncpa [#allocation6], 1
    %824 = vsyncpa [#allocation9], 1
    %825 = vsyncpa [#allocation12], 1
    %826 = vsyncpa [#allocation15], 1
    %827 = vsyncpa [#allocation18], 1
    %828 = vsyncpa [#allocation21], 1
    %829 = vsyncpa [#allocation4], 1

</llo_original>
